<compile_context>
chip_gen: v5e
topology: v5e:2x2
jax: 0.10.0
libtpu: 0.0.40
codegen_flags: <defaults>
</compile_context>

<pallas_src>
import jax
import jax.numpy as jnp
from jax import lax
from jax.experimental import pallas as pl
from jax.experimental.pallas import tpu as pltpu


# ----------------------------------------------------------------------------
# VMEM sizing helpers (generation-aware).
# ----------------------------------------------------------------------------
def _vmem_capacity_bytes():
    try:
        info = pltpu.get_tpu_info()
        cap = int(getattr(info, "vmem_capacity_bytes", 0))
        if cap > 0:
            return cap
    except Exception:
        pass
    return 64 * 1024 * 1024  # conservative fallback (v7x per-core VMEM)


def _vmem_needed(bm, D, tk, x_isz, w_isz, out_isz):
    # Double-buffer factors are included here ONCE (do not multiply again).
    wt = 2 * (tk * D + tk * D) * w_isz                    # W1 + W2^T tiles (x2 bufs)
    outs = 2 * (bm * D + bm * tk + bm * D) * out_isz      # xsave / hsave / xout (x2 bufs)
    scratch = bm * D * x_isz + bm * D * 4                 # x_res (compute dtype) + acc (f32)
    return wt + outs + scratch


# ----------------------------------------------------------------------------
# Wrapper: whole ZeroBubbleModel forward in a single pallas_call.
# ----------------------------------------------------------------------------
def zero_bubble_model_forward(x, w1_stack, w2t_stack, *, tk=None, bm=None):
    """
    x          : [B, D]        input activation
    w1_stack   : [L, 4D, D]    W1 per block, ORIGINAL nn.Linear layout (out, in)
    w2t_stack  : [L, 4D, D]    W2.T per block (transposed ONCE at init)
    returns ([[x_i, h_i] for each block], x_final)
    """
    B, D = x.shape
    L, H, D2 = w1_stack.shape
    assert D2 == D and w2t_stack.shape == (L, H, D)
    assert x.dtype == w1_stack.dtype == w2t_stack.dtype, \
        "activations and weights must share the compute dtype (f32/bf16)"

    x_isz = jnp.dtype(x.dtype).itemsize
    w_isz = jnp.dtype(w1_stack.dtype).itemsize
    out_isz = x_isz

    # Sub-32-bit activations pack 2 rows per sublane -> need 16-row tiles.
    sublane = 8 if x_isz >= 4 else 16
    if bm is None:
        # Engage megacore batch split only when the batch is large enough to
        # be compute-bound; otherwise keep a single batch tile.
        bm = 256 if (B >= 512 and B % 256 == 0) else B
    assert B % bm == 0 and bm % sublane == 0, \
        f"batch tile {bm} must divide B and be a multiple of {sublane}"
    assert D % 128 == 0 and H % 128 == 0, "dim / 4*dim must be multiples of 128"

    cap = _vmem_capacity_bytes()
    budget = int(cap * 0.85)  # leave compiler headroom under physical VMEM

    if tk is None:
        tk = 128
        t = H
        while t >= 128:
            if (H % t == 0 and t % 128 == 0 and
                    _vmem_needed(bm, D, t, x_isz, w_isz, out_isz) <= budget):
                tk = t
                break
            t -= 128
    assert tk % 128 == 0 and H % tk == 0
    n_k = H // tk
    n_b = B // bm

    needed = _vmem_needed(bm, D, tk, x_isz, w_isz, out_isz)
    vmem_limit = int(min(cap - (2 << 20),
                         max(needed + needed // 4 + (4 << 20), 32 << 20)))

    # Advisory cost for XLA scheduling around the custom call.
    flops = 4 * B * D * H * L  # two [B,D]x[D,4D]-sized matmuls per block
    bytes_accessed = ((w1_stack.size + w2t_stack.size) * w_isz
                      + x.size * x_isz
                      + (L * B * D + L * B * H + B * D) * out_isz)
    cost = pl.CostEstimate(flops=int(flops), transcendentals=0,
                           bytes_accessed=int(bytes_accessed))

    def kernel(x_hbm, w1_ref, w2t_ref, xsave_ref, hsave_ref, xout_ref,
               x_res, acc):
        """
        x_hbm     : [B, D]   model input, raw HBM ref (copied once per b-tile)
        w1_ref    : [tk, D]  W1 rows k*tk:(k+1)*tk of layer l (contiguous slab)
        w2t_ref   : [tk, D]  W2^T rows k*tk:(k+1)*tk of layer l (contiguous slab)
        xsave_ref : [bm, D]  saved layer input  -> block (l, b) of [L, B, D]
        hsave_ref : [bm, tk] saved layer hidden -> block (l, b, k) of [L, B, 4D]
        xout_ref  : [bm, D]  final activation   -> block b of [B, D]
        x_res     : VMEM [bm, D]   resident activation (compute dtype)
        acc       : VMEM [bm, D]   f32 accumulator for the second matmul
        """
        b = pl.program_id(0)
        l = pl.program_id(1)
        k = pl.program_id(2)
        n_l = pl.num_programs(1)
        nk = pl.num_programs(2)

        # First step of each batch tile: DMA the input slice into VMEM once.
        @pl.when((l == 0) & (k == 0))
        def _load_x():
            row0 = pl.multiple_of(b * bm, bm)
            pltpu.sync_copy(x_hbm.at[pl.ds(row0, bm), :], x_res)

        # Start of each layer: save the exact tensor fed to the matmuls.
        @pl.when(k == 0)
        def _save_x():
            xsave_ref[...] = x_res[...]

        xv = x_res[...]
        # h_tile = x @ W1^T  -> NT dot (contract last dims); MXU, f32 acc.
        h32 = lax.dot_general(xv, w1_ref[...], (((1,), (1,)), ((), ())),
                              preferred_element_type=jnp.float32)
        h = h32.astype(hsave_ref.dtype)
        hsave_ref[...] = h  # bit-identical to what feeds the second matmul

        # Partial o = h_tile @ W2^T[k-tile]  -> [bm, D], accumulated in f32.
        o_part = jnp.dot(h, w2t_ref[...], preferred_element_type=jnp.float32)

        @pl.when(k == 0)
        def _init_acc():
            acc[...] = o_part        # predicated first write: no zero-store

        @pl.when(k > 0)
        def _accumulate():
            acc[...] += o_part

        # End of layer: this layer's output becomes the next layer's input.
        @pl.when(k == nk - 1)
        def _next_x():
            x_res[...] = acc[...].astype(x_res.dtype)

        # Only the last layer's output is the model output.
        @pl.when((k == nk - 1) & (l == n_l - 1))
        def _final():
            xout_ref[...] = acc[...].astype(xout_ref.dtype)

    layer_x, layer_h, x_out = pl.pallas_call(
        kernel,
        out_shape=(
            jax.ShapeDtypeStruct((L, B, D), x.dtype),   # saved layer inputs
            jax.ShapeDtypeStruct((L, B, H), x.dtype),   # saved hiddens
            jax.ShapeDtypeStruct((B, D), x.dtype),      # final activation
        ),
        grid_spec=pltpu.PrefetchScalarGridSpec(
            num_scalar_prefetch=0,
            grid=(n_b, L, n_k),
            in_specs=[
                pl.BlockSpec(memory_space=pl.ANY),                        # x (HBM)
                pl.BlockSpec((None, tk, D), lambda b, l, k: (l, k, 0)),   # W1 slab
                pl.BlockSpec((None, tk, D), lambda b, l, k: (l, k, 0)),   # W2^T slab
            ],
            out_specs=(
                pl.BlockSpec((None, bm, D), lambda b, l, k: (l, b, 0)),   # x_i
                pl.BlockSpec((None, bm, tk), lambda b, l, k: (l, b, k)),  # h_i slab
                pl.BlockSpec((bm, D), lambda b, l, k: (b, 0)),            # x_final
            ),
            scratch_shapes=[
                pltpu.VMEM((bm, D), x.dtype),      # resident activation
                pltpu.VMEM((bm, D), jnp.float32),  # second-matmul accumulator
            ],
        ),
        compiler_params=pltpu.CompilerParams(
            # batch tiles are independent -> parallel (engages 2nd TC on v7x);
            # layer / k axes carry resident state -> arbitrary.
            dimension_semantics=("parallel", "arbitrary", "arbitrary"),
            vmem_limit_bytes=vmem_limit,
        ),
        cost_estimate=cost,
    )(x, w1_stack, w2t_stack)

    layers_output = [[layer_x[i], layer_h[i]] for i in range(L)]
    return layers_output, x_out


# ----------------------------------------------------------------------------
# Parameter init: PyTorch-Linear-style uniform.  W1 stays in its original
# [out, in] layout (contiguous k-tile DMA); W2 is transposed ONCE at init.
# ----------------------------------------------------------------------------
def init_params(key, dim, num_local_blocks, dtype=jnp.float32):
    hidden = 4 * dim
    k1, k2 = jax.random.split(key)
    bound1 = 1.0 / (dim ** 0.5)
    bound2 = 1.0 / (hidden ** 0.5)
    w1 = jax.random.uniform(k1, (num_local_blocks, hidden, dim), dtype, -bound1, bound1)
    w2 = jax.random.uniform(k2, (num_local_blocks, dim, hidden), dtype, -bound2, bound2)
    w2t = jnp.transpose(w2, (0, 2, 1))  # [L, 4D, D]  == W2.T per block
    return w1, w2t


if __name__ == "__main__":
    # Small, lane-dense shapes: dim multiple of 128, batch multiple of 8.
    dim = 128
    batch = 8
    num_blocks = 2
    world_size = 1
    local_num_blocks = num_blocks // world_size

    key = jax.random.PRNGKey(0)
    kx, kp = jax.random.split(key)
    x = jax.random.normal(kx, (batch, dim), jnp.float32)
    w1, w2t = init_params(kp, dim, local_num_blocks)

    fwd = jax.jit(zero_bubble_model_forward, static_argnames=("tk", "bm"))
    # tk=256 -> 2 hidden tiles, exercising the K-accumulation path.
    layers_output, x_out = fwd(x, w1, w2t, tk=256)

    x_out = jax.block_until_ready(x_out)
    for lo in layers_output:
        for t in lo:
            jax.block_until_ready(t)

    # Pure-JAX reference (same semantics as the PyTorch forward).
    x_ref = x
    ref_layers = []
    for i in range(local_num_blocks):
        h_ref = x_ref @ w1[i].T           # nn.Linear(dim, 4*dim, bias=False)
        ref_layers.append((x_ref, h_ref))
        x_ref = h_ref @ w2t[i]            # nn.Linear(4*dim, dim, bias=False)

    assert jnp.allclose(x_out, x_ref, atol=1e-4, rtol=1e-4)
    for (xi, hi), (xr, hr) in zip(layers_output, ref_layers):
        assert jnp.allclose(xi, xr, atol=1e-4, rtol=1e-4)
        assert jnp.allclose(hi, hr, atol=1e-4, rtol=1e-4)

    print("KERNEL_OK")
</pallas_src>

<mosaic_0001>
module attributes {stable_mosaic.version = 11 : i64} {
  func.func @kernel(%arg0: i32, %arg1: i32, %arg2: i32, %arg3: memref<8x128xf32, #tpu.memory_space<any>>, %arg4: memref<1x256x128xf32, #tpu.memory_space<vmem>>, %arg5: memref<1x256x128xf32, #tpu.memory_space<vmem>>, %arg6: memref<1x8x128xf32, #tpu.memory_space<vmem>>, %arg7: memref<1x8x256xf32, #tpu.memory_space<vmem>>, %arg8: memref<8x128xf32, #tpu.memory_space<vmem>>, %arg9: memref<8x128xf32, #tpu.memory_space<vmem>>, %arg10: memref<8x128xf32, #tpu.memory_space<vmem>>) attributes {dimension_semantics = [#tpu.dimension_semantics<parallel>, #tpu.dimension_semantics<arbitrary>, #tpu.dimension_semantics<arbitrary>], iteration_bounds = array<i64: 1, 2, 2>, scalar_prefetch = 0 : i64, scratch_operands = 2 : i64, tpu.core_type = #tpu.core_type<tc>, window_params = [{}, {transform_indices = @transform_1, window_bounds = array<i64: 1, 256, 128>}, {transform_indices = @transform_2, window_bounds = array<i64: 1, 256, 128>}, {transform_indices = @transform_3, window_bounds = array<i64: 1, 8, 128>}, {transform_indices = @transform_4, window_bounds = array<i64: 1, 8, 256>}, {transform_indices = @transform_5, window_bounds = array<i64: 8, 128>}]} {
    %c0_i32 = arith.constant 0 : i32
    %0 = arith.cmpi eq, %arg1, %c0_i32 : i32
    %c0_i32_0 = arith.constant 0 : i32
    %1 = arith.cmpi eq, %arg2, %c0_i32_0 : i32
    %2 = arith.andi %0, %1 : i1
    %3 = arith.extui %2 : i1 to i32
    %c0_i32_1 = arith.constant 0 : i32
    %4 = arith.cmpi ne, %3, %c0_i32_1 : i32
    scf.if %4 {
      %c8_i32 = arith.constant 8 : i32
      %32 = arith.muli %arg0, %c8_i32 : i32
      %33 = tpu.assume_multiple %32, 8 : i32
      "tpu.region"() ({
        %34 = tpu.sem_alloc : memref<!tpu.dma_semaphore, #tpu.memory_space<semaphore_mem>>
        %c0_i32_23 = arith.constant 0 : i32
        %35 = tpu.memref_slice %arg3[%33, %c0_i32_23] : memref<8x128xf32, #tpu.memory_space<any>> -> memref<8x128xf32, #tpu.memory_space<any>>
        tpu.enqueue_dma source(%35 : memref<8x128xf32, #tpu.memory_space<any>>) target(%arg9 : memref<8x128xf32, #tpu.memory_space<vmem>>) target_semaphore(%34 : memref<!tpu.dma_semaphore, #tpu.memory_space<semaphore_mem>>)
        %c0_i32_24 = arith.constant 0 : i32
        %36 = tpu.memref_slice %arg3[%33, %c0_i32_24] : memref<8x128xf32, #tpu.memory_space<any>> -> memref<8x128xf32, #tpu.memory_space<any>>
        tpu.wait_dma2 semaphore(%34 : memref<!tpu.dma_semaphore, #tpu.memory_space<semaphore_mem>>) src(%36 : memref<8x128xf32, #tpu.memory_space<any>>) dst(%arg9 : memref<8x128xf32, #tpu.memory_space<vmem>>)
        tpu.yield
      }) : () -> ()
    } else {
    }
    %c0_i32_2 = arith.constant 0 : i32
    %5 = arith.cmpi eq, %arg2, %c0_i32_2 : i32
    %6 = arith.extui %5 : i1 to i32
    %c0_i32_3 = arith.constant 0 : i32
    %7 = arith.cmpi ne, %6, %c0_i32_3 : i32
    scf.if %7 {
      %c0_23 = arith.constant 0 : index
      %c0_24 = arith.constant 0 : index
      %32 = vector.load %arg9[%c0_23, %c0_24] : memref<8x128xf32, #tpu.memory_space<vmem>>, vector<8x128xf32>
      %c0_25 = arith.constant 0 : index
      %c0_26 = arith.constant 0 : index
      %c0_27 = arith.constant 0 : index
      %33 = vector.load %arg6[%c0_25, %c0_26, %c0_27] : memref<1x8x128xf32, #tpu.memory_space<vmem>>, vector<1x8x128xf32>
      %34 = vector.shape_cast %33 : vector<1x8x128xf32> to vector<8x128xf32>
      %35 = vector.shape_cast %32 : vector<8x128xf32> to vector<1x8x128xf32>
      tpu.vector_store %arg6[%c0_25, %c0_26, %c0_27], %35 {strides = array<i32>} : memref<1x8x128xf32, #tpu.memory_space<vmem>>, vector<1x8x128xf32>,
    } else {
    }
    %c0 = arith.constant 0 : index
    %c0_4 = arith.constant 0 : index
    %8 = vector.load %arg9[%c0, %c0_4] : memref<8x128xf32, #tpu.memory_space<vmem>>, vector<8x128xf32>
    %c0_5 = arith.constant 0 : index
    %c0_6 = arith.constant 0 : index
    %c0_7 = arith.constant 0 : index
    %9 = vector.load %arg4[%c0_5, %c0_6, %c0_7] : memref<1x256x128xf32, #tpu.memory_space<vmem>>, vector<1x256x128xf32>
    %10 = vector.shape_cast %9 : vector<1x256x128xf32> to vector<256x128xf32>
    %cst = arith.constant dense<0.000000e+00> : vector<8x256xf32>
    %11 = tpu.matmul %8, %10, %cst {dimension_numbers = #tpu.dot_dimension_numbers<[1], [1], [0], [0], [0, 0, 1, 0], [], []>} : vector<8x128xf32>, vector<256x128xf32>, vector<8x256xf32> -> vector<8x256xf32>
    %c0_8 = arith.constant 0 : index
    %c0_9 = arith.constant 0 : index
    %c0_10 = arith.constant 0 : index
    %12 = vector.load %arg7[%c0_8, %c0_9, %c0_10] : memref<1x8x256xf32, #tpu.memory_space<vmem>>, vector<1x8x256xf32>
    %13 = vector.shape_cast %12 : vector<1x8x256xf32> to vector<8x256xf32>
    %14 = vector.shape_cast %11 : vector<8x256xf32> to vector<1x8x256xf32>
    tpu.vector_store %arg7[%c0_8, %c0_9, %c0_10], %14 {strides = array<i32>} : memref<1x8x256xf32, #tpu.memory_space<vmem>>, vector<1x8x256xf32>,
    %c0_11 = arith.constant 0 : index
    %c0_12 = arith.constant 0 : index
    %c0_13 = arith.constant 0 : index
    %15 = vector.load %arg5[%c0_11, %c0_12, %c0_13] : memref<1x256x128xf32, #tpu.memory_space<vmem>>, vector<1x256x128xf32>
    %16 = vector.shape_cast %15 : vector<1x256x128xf32> to vector<256x128xf32>
    %cst_14 = arith.constant dense<0.000000e+00> : vector<8x128xf32>
    %17 = tpu.matmul %11, %16, %cst_14 {dimension_numbers = #tpu.dot_dimension_numbers<[1], [0], [0], [1], [0, 0, 1, 1], [], []>} : vector<8x256xf32>, vector<256x128xf32>, vector<8x128xf32> -> vector<8x128xf32>
    %c0_i32_15 = arith.constant 0 : i32
    %18 = arith.cmpi eq, %arg2, %c0_i32_15 : i32
    %19 = arith.extui %18 : i1 to i32
    %c0_i32_16 = arith.constant 0 : i32
    %20 = arith.cmpi ne, %19, %c0_i32_16 : i32
    scf.if %20 {
      %c0_23 = arith.constant 0 : index
      %c0_24 = arith.constant 0 : index
      %32 = vector.load %arg10[%c0_23, %c0_24] : memref<8x128xf32, #tpu.memory_space<vmem>>, vector<8x128xf32>
      tpu.vector_store %arg10[%c0_23, %c0_24], %17 {strides = array<i32>} : memref<8x128xf32, #tpu.memory_space<vmem>>, vector<8x128xf32>,
    } else {
    }
    %c0_i32_17 = arith.constant 0 : i32
    %21 = arith.cmpi sgt, %arg2, %c0_i32_17 : i32
    %22 = arith.extui %21 : i1 to i32
    %c0_i32_18 = arith.constant 0 : i32
    %23 = arith.cmpi ne, %22, %c0_i32_18 : i32
    scf.if %23 {
      %c0_23 = arith.constant 0 : index
      %c0_24 = arith.constant 0 : index
      %32 = vector.load %arg10[%c0_23, %c0_24] : memref<8x128xf32, #tpu.memory_space<vmem>>, vector<8x128xf32>
      %33 = arith.addf %32, %17 : vector<8x128xf32>
      %c0_25 = arith.constant 0 : index
      %c0_26 = arith.constant 0 : index
      %34 = vector.load %arg10[%c0_25, %c0_26] : memref<8x128xf32, #tpu.memory_space<vmem>>, vector<8x128xf32>
      tpu.vector_store %arg10[%c0_25, %c0_26], %33 {strides = array<i32>} : memref<8x128xf32, #tpu.memory_space<vmem>>, vector<8x128xf32>,
    } else {
    }
    %c1_i32 = arith.constant 1 : i32
    %24 = arith.cmpi eq, %arg2, %c1_i32 : i32
    %25 = arith.extui %24 : i1 to i32
    %c0_i32_19 = arith.constant 0 : i32
    %26 = arith.cmpi ne, %25, %c0_i32_19 : i32
    scf.if %26 {
      %c0_23 = arith.constant 0 : index
      %c0_24 = arith.constant 0 : index
      %32 = vector.load %arg10[%c0_23, %c0_24] : memref<8x128xf32, #tpu.memory_space<vmem>>, vector<8x128xf32>
      %c0_25 = arith.constant 0 : index
      %c0_26 = arith.constant 0 : index
      %33 = vector.load %arg9[%c0_25, %c0_26] : memref<8x128xf32, #tpu.memory_space<vmem>>, vector<8x128xf32>
      tpu.vector_store %arg9[%c0_25, %c0_26], %32 {strides = array<i32>} : memref<8x128xf32, #tpu.memory_space<vmem>>, vector<8x128xf32>,
    } else {
    }
    %c1_i32_20 = arith.constant 1 : i32
    %27 = arith.cmpi eq, %arg2, %c1_i32_20 : i32
    %c1_i32_21 = arith.constant 1 : i32
    %28 = arith.cmpi eq, %arg1, %c1_i32_21 : i32
    %29 = arith.andi %27, %28 : i1
    %30 = arith.extui %29 : i1 to i32
    %c0_i32_22 = arith.constant 0 : i32
    %31 = arith.cmpi ne, %30, %c0_i32_22 : i32
    scf.if %31 {
      %c0_23 = arith.constant 0 : index
      %c0_24 = arith.constant 0 : index
      %32 = vector.load %arg10[%c0_23, %c0_24] : memref<8x128xf32, #tpu.memory_space<vmem>>, vector<8x128xf32>
      %c0_25 = arith.constant 0 : index
      %c0_26 = arith.constant 0 : index
      %33 = vector.load %arg8[%c0_25, %c0_26] : memref<8x128xf32, #tpu.memory_space<vmem>>, vector<8x128xf32>
      tpu.vector_store %arg8[%c0_25, %c0_26], %32 {strides = array<i32>} : memref<8x128xf32, #tpu.memory_space<vmem>>, vector<8x128xf32>,
    } else {
    }
    return
  }
  func.func @transform_1(%arg0: i32, %arg1: i32, %arg2: i32) -> (i32, i32, i32) {
    %c0_i32 = arith.constant 0 : i32
    %c0_i32_0 = arith.constant 0 : i32
    return %arg1, %arg2, %c0_i32 : i32, i32, i32
  }
  func.func @transform_2(%arg0: i32, %arg1: i32, %arg2: i32) -> (i32, i32, i32) {
    %c0_i32 = arith.constant 0 : i32
    %c0_i32_0 = arith.constant 0 : i32
    return %arg1, %arg2, %c0_i32 : i32, i32, i32
  }
  func.func @transform_3(%arg0: i32, %arg1: i32, %arg2: i32) -> (i32, i32, i32) {
    %c0_i32 = arith.constant 0 : i32
    %c0_i32_0 = arith.constant 0 : i32
    return %arg1, %arg0, %c0_i32 : i32, i32, i32
  }
  func.func @transform_4(%arg0: i32, %arg1: i32, %arg2: i32) -> (i32, i32, i32) {
    %c0_i32 = arith.constant 0 : i32
    return %arg1, %arg0, %arg2 : i32, i32, i32
  }
  func.func @transform_5(%arg0: i32, %arg1: i32, %arg2: i32) -> (i32, i32) {
    %c0_i32 = arith.constant 0 : i32
    %c0_i32_0 = arith.constant 0 : i32
    return %arg0, %c0_i32 : i32, i32
  }
}

</mosaic_0001>

<llo_original>
// kernel: zero_bubble_model_forward.1
$region0: #{zero_bubble_model_forward.1}
  #allocation0 [shape = 'u32[]', space=smem, size = 0x4, offset = 0x4, fixed_abs, tag = 'smem constant byte address 0x4 - core index']
  #allocation1 [shape = 'u32[72,128]{1,0:T(1,128)}', space=vmem, size = 0x9000, scoped, tag = 'internal scratch']
  #allocation2 [shape = 'f32[8,128]{1,0:T(8,128)}', space=vmem, size = 0x1000, scoped, tag = 'scratch operand']
  #allocation3 [shape = 'f32[8,128]{1,0:T(8,128)}', space=vmem, size = 0x1000, scoped, tag = 'scratch operand']
  #allocation11 [shape = 's32[]', space=sflag, size = 0x4, offset = 0, fixed_abs, tag = 'sflag constant byte address 0x0 - dummy sync flag']
  #allocation12 [shape = 's32[]', space=sflag, size = 0x4, offset = 0, fixed_abs, tag = 'sflag constant byte address 0x0 - dummy sync flag']
  #allocation13 [shape = 'u32[]', space=smem, size = 0x4, offset = 0x44, fixed_abs, tag = 'smem constant byte address 0x44 - assertion arg 0']
  #allocation14 [shape = 'u32[]', space=smem, size = 0x4, offset = 0x48, fixed_abs, tag = 'smem constant byte address 0x48 - assertion arg 1']
  %s0 = inlined_call_operand.hbm [shape: f32[8,128], index: 0, kind: input, shape index: {}]
  %s1 = inlined_call_operand.hbm [shape: f32[2,512,128], index: 1, kind: input, shape index: {}]
  %s2 = inlined_call_operand.hbm [shape: f32[2,512,128], index: 2, kind: input, shape index: {}]
  %s3 = inlined_call_operand.vmem [shape: f32[2,8,128], index: 3, kind: output, shape index: {0}]
  %s4 = inlined_call_operand.vmem [shape: f32[2,8,512], index: 4, kind: output, shape index: {1}]
  %s5 = inlined_call_operand.hbm [shape: f32[8,128], index: 5, kind: output, shape index: {2}]
  %6 = xla_tuple %s3, %s4, %s5
  %s7 = sld [smem:[#allocation0]]
  $region94: #{zero_bubble_model_forward.1} parent=0
    _
  %s9 = ssub.s32 1, %s7
  %s10 = scalar_select 0, %s9, %s7
  $region1: #{zero_bubble_model_forward.1} parent=0
    #allocation4 [shape = 'u8[262144]{0}', space=vmem, size = 0x40000, scoped, tag = 'input window, operand 1']
    #allocation5 [shape = 's32[2]{0}', space=sflag, size = 0x8, scoped, tag = 'scoped memory for zero_bubble_model_forward.1']
    #allocation6 [shape = 's32[2]{0}', space=sflag, size = 0x8, scoped, tag = 'scoped memory for zero_bubble_model_forward.1']
    #allocation7 [shape = 'u8[262144]{0}', space=vmem, size = 0x40000, scoped, tag = 'input window, operand 2']
    #allocation8 [shape = 's32[2]{0}', space=sflag, size = 0x8, scoped, tag = 'scoped memory for zero_bubble_model_forward.1']
    #allocation9 [shape = 'u8[4096]{0}', space=vmem, size = 0x1000, scoped, tag = 'output window, operand 2, single buffered']
    %11 = vsyncpa [#allocation5], 0
    %s12 = scalar_lea.sflag [#allocation5], 1
    %13 = vsyncpa %s12, 0
    %14 = vsyncpa [#allocation8], 0
    %s15 = scalar_lea.sflag [#allocation8], 1
    %16 = vsyncpa %s15, 0
    %17 = vsyncpa [#allocation6], 0
    loop: start=0, step=1, limit=6
    $region2: #{zero_bubble_model_forward.1} parent=1 // loop_pre_header
      _
    $region3: #{zero_bubble_model_forward.1} parent=1 // loop_header
      %s19 = sphi 0, %s23
      %p20 = scmp.ge.s32.totalorder %s19, 6
      %s26 = sphi 0, %s45
      %s27 = sphi 0, %s41
      %s28 = sphi 0, %s37
      %s29 = sphi 0, %s26
      %s30 = sphi 0, %s27
      %s31 = sphi 0, %s28
      %s32 = sphi 0, %s29
      %s33 = sphi 0, %s30
      %s34 = sphi 0, %s31
      %s50 = sphi 0, %s52
      %s53 = sphi 0, %s50
      %s54 = sphi 0, %s53
      %s70 = sphi 0, %s54
      %s78 = sphi 0, %s80
      %s81 = sphi 0, %s78
      %s82 = sphi 0, %s81
      %s98 = sphi 0, %s82
      %s106 = sphi 0, %s108
      %s109 = sphi 0, %s106
      %s110 = sphi 0, %s109
      %s126 = sphi 0, %s110
      %s136 = sphi 0, %s138
      %s139 = sphi 0, %s136
      %s140 = sphi 0, %s139
      %s156 = sphi 0, %s140
      %s162 = sphi 0, %s164
      %s165 = sphi 0, %s162
      %s166 = sphi 0, %s165
      %s182 = sphi 0, %s166
    $region4: #{zero_bubble_model_forward.1} parent=1 // loop_header_branch
      %22 = sbr.rel (%p20) target = $region8
    $region5: #{zero_bubble_model_forward.1} parent=1 // loop_body
      %s24 = ssub.s32 %s19, 1
      %s25 = ssub.s32 %s19, 2
      %s35 = sadd.s32 1, %s28
      %p36 = scmp.ge.s32.totalorder %s35, 2
      %s37 = scalar_select %p36, 0, %s35
      %s38 = sadd.s32 1, %s27
      %s39 = scalar_select %p36, %s38, %s27
      %p40 = scmp.ge.s32.totalorder %s39, 2
      %s41 = scalar_select %p40, 0, %s39
      %s42 = sadd.s32 1, %s26
      %s43 = scalar_select %p40, %s42, %s26
      %p44 = scmp.ge.s32.totalorder %s43, 1
      %s45 = scalar_select %p44, 0, %s43
      %s46 = ssub.s32 %s27, %s41
      %s47 = ssub.s32 %s28, %s37
      %s48 = sor.u32 %s46, %s47
      %p49 = scmp.eq.s32.totalorder %s48, 0
      %s51 = sadd.s32 %s50, 1
      %s52 = scalar_select %p49, %s50, %s51
      %p55 = pneg %p49
      %p56 = scmp.eq.s32.totalorder %s19, 3
      %p57 = por %p55, %p56
      %p58 = scmp.ne.s32.totalorder %s50, %s53
      %p59 = scmp.eq.s32.totalorder %s19, 0
      %p60 = por %p58, %p59
      %p61 = scmp.ne.s32.totalorder %s50, %s53
      %p62 = scmp.eq.s32.totalorder %s24, 3
      %p63 = por %p61, %p62
      %p64 = scmp.ne.s32.totalorder %s53, %s54
      %p65 = scmp.eq.s32.totalorder %s24, 0
      %p66 = por %p64, %p65
      %p67 = scmp.ne.s32.totalorder %s53, %s54
      %p68 = scmp.eq.s32.totalorder %s25, 3
      %p69 = por %p67, %p68
      %p71 = scmp.ne.s32.totalorder %s54, %s70
      %p72 = scmp.eq.s32.totalorder %s25, 0
      %p73 = por %p71, %p72
      %s74 = ssub.s32 %s27, %s41
      %s75 = ssub.s32 %s28, %s37
      %s76 = sor.u32 %s74, %s75
      %p77 = scmp.eq.s32.totalorder %s76, 0
      %s79 = sadd.s32 %s78, 1
      %s80 = scalar_select %p77, %s78, %s79
      %p83 = pneg %p77
      %p84 = scmp.eq.s32.totalorder %s19, 3
      %p85 = por %p83, %p84
      %p86 = scmp.ne.s32.totalorder %s78, %s81
      %p87 = scmp.eq.s32.totalorder %s19, 0
      %p88 = por %p86, %p87
      %p89 = scmp.ne.s32.totalorder %s78, %s81
      %p90 = scmp.eq.s32.totalorder %s24, 3
      %p91 = por %p89, %p90
      %p92 = scmp.ne.s32.totalorder %s81, %s82
      %p93 = scmp.eq.s32.totalorder %s24, 0
      %p94 = por %p92, %p93
      %p95 = scmp.ne.s32.totalorder %s81, %s82
      %p96 = scmp.eq.s32.totalorder %s25, 3
      %p97 = por %p95, %p96
      %p99 = scmp.ne.s32.totalorder %s82, %s98
      %p100 = scmp.eq.s32.totalorder %s25, 0
      %p101 = por %p99, %p100
      %s102 = ssub.s32 %s27, %s41
      %s103 = ssub.s32 %s26, %s45
      %s104 = sor.u32 %s102, %s103
      %p105 = scmp.eq.s32.totalorder %s104, 0
      %s107 = sadd.s32 %s106, 1
      %s108 = scalar_select %p105, %s106, %s107
      %p111 = pneg %p105
      %p112 = scmp.eq.s32.totalorder %s19, 3
      %p113 = por %p111, %p112
      %p114 = scmp.ne.s32.totalorder %s106, %s109
      %p115 = scmp.eq.s32.totalorder %s19, 0
      %p116 = por %p114, %p115
      %p117 = scmp.ne.s32.totalorder %s106, %s109
      %p118 = scmp.eq.s32.totalorder %s24, 3
      %p119 = por %p117, %p118
      %p120 = scmp.ne.s32.totalorder %s109, %s110
      %p121 = scmp.eq.s32.totalorder %s24, 0
      %p122 = por %p120, %p121
      %p123 = scmp.ne.s32.totalorder %s109, %s110
      %p124 = scmp.eq.s32.totalorder %s25, 3
      %p125 = por %p123, %p124
      %p127 = scmp.ne.s32.totalorder %s110, %s126
      %p128 = scmp.eq.s32.totalorder %s25, 0
      %p129 = por %p127, %p128
      %s130 = ssub.s32 %s27, %s41
      %s131 = ssub.s32 %s26, %s45
      %s132 = sor.u32 %s130, %s131
      %s133 = ssub.s32 %s28, %s37
      %s134 = sor.u32 %s132, %s133
      %p135 = scmp.eq.s32.totalorder %s134, 0
      %s137 = sadd.s32 %s136, 1
      %s138 = scalar_select %p135, %s136, %s137
      %p141 = pneg %p135
      %p142 = scmp.eq.s32.totalorder %s19, 3
      %p143 = por %p141, %p142
      %p144 = scmp.ne.s32.totalorder %s136, %s139
      %p145 = scmp.eq.s32.totalorder %s19, 0
      %p146 = por %p144, %p145
      %p147 = scmp.ne.s32.totalorder %s136, %s139
      %p148 = scmp.eq.s32.totalorder %s24, 3
      %p149 = por %p147, %p148
      %p150 = scmp.ne.s32.totalorder %s139, %s140
      %p151 = scmp.eq.s32.totalorder %s24, 0
      %p152 = por %p150, %p151
      %p153 = scmp.ne.s32.totalorder %s139, %s140
      %p154 = scmp.eq.s32.totalorder %s25, 3
      %p155 = por %p153, %p154
      %p157 = scmp.ne.s32.totalorder %s140, %s156
      %p158 = scmp.eq.s32.totalorder %s25, 0
      %p159 = por %p157, %p158
      %s160 = ssub.s32 %s26, %s45
      %p161 = scmp.eq.s32.totalorder %s160, 0
      %s163 = sadd.s32 %s162, 1
      %s164 = scalar_select %p161, %s162, %s163
      %p167 = pneg %p161
      %p168 = scmp.eq.s32.totalorder %s19, 3
      %p169 = por %p167, %p168
      %p170 = scmp.ne.s32.totalorder %s162, %s165
      %p171 = scmp.eq.s32.totalorder %s19, 0
      %p172 = por %p170, %p171
      %p173 = scmp.ne.s32.totalorder %s162, %s165
      %p174 = scmp.eq.s32.totalorder %s24, 3
      %p175 = por %p173, %p174
      %p176 = scmp.ne.s32.totalorder %s165, %s166
      %p177 = scmp.eq.s32.totalorder %s24, 0
      %p178 = por %p176, %p177
      %p179 = scmp.ne.s32.totalorder %s165, %s166
      %p180 = scmp.eq.s32.totalorder %s25, 3
      %p181 = por %p179, %p180
      %p183 = scmp.ne.s32.totalorder %s166, %s182
      %p184 = scmp.eq.s32.totalorder %s25, 0
      %p185 = por %p183, %p184
      %p186 = scmp.le.s32.totalorder 1, %s19
      %p187 = scmp.lt.s32.totalorder %s19, 5
      %p188 = pnand %p186, %p187
      %p189 = pneg %p188
      // Predicated region
      $region9: #{zero_bubble_model_forward.1} parent=5 // pred_check
        _
      $region10: #{zero_bubble_model_forward.1} parent=5 // pred_check_branch
        %191 = sbr.rel (%p188) target = $region12
      $region11: #{zero_bubble_model_forward.1} parent=5 // pred_region
        %s192 = ssub.s32 %s19, 1
      $region12: #{zero_bubble_model_forward.1} parent=5 // pred_fallthru
        _
      %p193 = scmp.lt.s32.totalorder %s19, 4
      // Predicated region
      $region13: #{zero_bubble_model_forward.1} parent=5 // pred_check
        %p194 = pneg %p193
      $region14: #{zero_bubble_model_forward.1} parent=5 // pred_check_branch
        %196 = sbr.rel (%p194) target = $region16
      $region15: #{zero_bubble_model_forward.1} parent=5 // pred_region
        // Predicated region
        $region17: #{zero_bubble_model_forward.1} parent=15 // pred_check
          %p197 = pneg %p60
        $region18: #{zero_bubble_model_forward.1} parent=15 // pred_check_branch
          %199 = sbr.rel (%p197) target = $region20
        $region19: #{zero_bubble_model_forward.1} parent=15 // pred_region
          %s200 = sand.u32 %s50, 1
          %s201 = scalar_lea.sflag [#allocation5], %s200
          %s202 = sand.u32 %s50, 1
          %s203 = smul.addr %s202, 256
          %s204 = scalar_lea.vmem [#allocation4], %s203
          %s205 = smul.u32 32, %s28
          %207 = vsyncadd %s201, 0
          %s208 = smul.addr %s27, 64
          %s209 = sadd.s32 %s205, %s208
          %s210 = smul.addr %s209, 8
          %s211 = scalar_lea.hbm %s1, %s210
          %s212 = sshll.u32 %s211, 4
          %s213 = int_to_ptr.hbm [resolvable:$true] %s212
          %s214 = sshll.u32 %s204, 4
          %s215 = int_to_ptr.vmem [resolvable:$true] %s214
          %220 = dma.hbm_to_vmem [thread:$0]  %s213, 4096, %s215, %s201, 128, 128, 8
        $region20: #{zero_bubble_model_forward.1} parent=15 // pred_fallthru
          _
        // Predicated region
        $region21: #{zero_bubble_model_forward.1} parent=15 // pred_check
          %p221 = pneg %p88
        $region22: #{zero_bubble_model_forward.1} parent=15 // pred_check_branch
          %223 = sbr.rel (%p221) target = $region24
        $region23: #{zero_bubble_model_forward.1} parent=15 // pred_region
          %s224 = sand.u32 %s78, 1
          %s225 = scalar_lea.sflag [#allocation8], %s224
          %s226 = sand.u32 %s78, 1
          %s227 = smul.addr %s226, 256
          %s228 = scalar_lea.vmem [#allocation7], %s227
          %s229 = smul.u32 32, %s28
          %231 = vsyncadd %s225, 0
          %s232 = smul.addr %s27, 64
          %s233 = sadd.s32 %s229, %s232
          %s234 = smul.addr %s233, 8
          %s235 = scalar_lea.hbm %s2, %s234
          %s236 = sshll.u32 %s235, 4
          %s237 = int_to_ptr.hbm [resolvable:$true] %s236
          %s238 = sshll.u32 %s228, 4
          %s239 = int_to_ptr.vmem [resolvable:$true] %s238
          %244 = dma.hbm_to_vmem [thread:$0]  %s237, 4096, %s239, %s225, 128, 128, 8
        $region24: #{zero_bubble_model_forward.1} parent=15 // pred_fallthru
          _
      $region16: #{zero_bubble_model_forward.1} parent=5 // pred_fallthru
        _
      %p245 = scmp.le.s32.totalorder 1, %s19
      %p246 = scmp.lt.s32.totalorder %s19, 5
      %p247 = pnand %p245, %p246
      %p248 = pneg %p247
      // Predicated region
      $region25: #{zero_bubble_model_forward.1} parent=5 // pred_check
        _
      $region26: #{zero_bubble_model_forward.1} parent=5 // pred_check_branch
        %250 = sbr.rel (%p247) target = $region28
      $region27: #{zero_bubble_model_forward.1} parent=5 // pred_region
        %s251 = ssub.s32 %s19, 1
        %s252 = sand.u32 %s53, 1
        %s253 = scalar_lea.sflag [#allocation5], %s252
        %s254 = sand.u32 %s53, 1
        %s255 = smul.addr %s254, 256
        %s256 = scalar_lea.vmem [#allocation4], %s255
        // Predicated region
        $region29: #{zero_bubble_model_forward.1} parent=27 // pred_check
          %p257 = pneg %p66
        $region30: #{zero_bubble_model_forward.1} parent=27 // pred_check_branch
          %259 = sbr.rel (%p257) target = $region32
        $region31: #{zero_bubble_model_forward.1} parent=27 // pred_region
          %261 = dma.done %s253, 4096
        $region32: #{zero_bubble_model_forward.1} parent=27 // pred_fallthru
          _
        %s262 = sand.u32 %s81, 1
        %s263 = scalar_lea.sflag [#allocation8], %s262
        %s264 = sand.u32 %s81, 1
        %s265 = smul.addr %s264, 256
        %s266 = scalar_lea.vmem [#allocation7], %s265
        // Predicated region
        $region33: #{zero_bubble_model_forward.1} parent=27 // pred_check
          %p267 = pneg %p94
        $region34: #{zero_bubble_model_forward.1} parent=27 // pred_check_branch
          %269 = sbr.rel (%p267) target = $region36
        $region35: #{zero_bubble_model_forward.1} parent=27 // pred_region
          %271 = dma.done %s263, 4096
        $region36: #{zero_bubble_model_forward.1} parent=27 // pred_fallthru
          _
        %s272 = sand.u32 %s53, 1
        %s273 = scalar_lea.sflag [#allocation5], %s272
        %s274 = sand.u32 %s53, 1
        %s275 = smul.addr %s274, 256
        %s276 = scalar_lea.vmem [#allocation4], %s275
        %p277 = pneg %p66
        %p278 = pneg %p63
        %s279 = sand.u32 %s81, 1
        %s280 = scalar_lea.sflag [#allocation8], %s279
        %s281 = sand.u32 %s81, 1
        %s282 = smul.addr %s281, 256
        %s283 = scalar_lea.vmem [#allocation7], %s282
        %p284 = pneg %p94
        %p285 = pneg %p91
        %p286 = pneg %p122
        %p287 = pneg %p119
        %p288 = scmp.lt.s32.totalorder %s30, 1
        %s289 = scalar_select %p288, %s30, 1
        %p290 = scmp.lt.s32.totalorder %s29, 0
        %s291 = scalar_select %p290, %s29, 0
        %s292 = sadd.s32 %s291, %s289
        %s293 = smul.addr %s292, 8
        %s294 = scalar_lea.vmem %s3, %s293
        %p295 = pneg %p152
        %p296 = pneg %p149
        %s297 = smul.u32 2, %s31
        %p298 = scmp.lt.s32.totalorder %s30, 1
        %s299 = scalar_select %p298, %s30, 1
        %p300 = scmp.lt.s32.totalorder %s29, 0
        %s301 = scalar_select %p300, %s29, 0
        %p302 = scmp.lt.s32.totalorder %s297, 3
        %s303 = scalar_select %p302, %s297, 3
        %s304 = smul.addr %s301, 4
        %s305 = sadd.s32 %s303, %s304
        %s306 = smul.addr %s299, 4
        %s307 = sadd.s32 %s305, %s306
        %s308 = smul.addr %s307, 8
        %s309 = scalar_lea.vmem %s4, %s308
        %p310 = pneg %p178
        %p311 = pneg %p175
        %s312 = smul.u32 32, %s31
        %s313 = smul.u32 32, %s31
        %p314 = scmp.lt.s32.totalorder %s30, 1
        %s315 = scalar_select %p314, %s30, 1
        %p316 = scmp.lt.s32.totalorder %s29, 0
        %s317 = scalar_select %p316, %s29, 0
        %s318 = sadd.s32 %s317, %s315
        %s319 = smul.addr %s318, 8
        %s320 = scalar_lea.vmem %s3, %s319
        %s321 = smul.u32 2, %s31
        %p322 = scmp.lt.s32.totalorder %s30, 1
        %s323 = scalar_select %p322, %s30, 1
        %p324 = scmp.lt.s32.totalorder %s29, 0
        %s325 = scalar_select %p324, %s29, 0
        %p326 = scmp.lt.s32.totalorder %s321, 3
        %s327 = scalar_select %p326, %s321, 3
        %s328 = smul.addr %s325, 4
        %s329 = sadd.s32 %s327, %s328
        %s330 = smul.addr %s323, 4
        %s331 = sadd.s32 %s329, %s330
        %s332 = smul.addr %s331, 8
        %s333 = scalar_lea.vmem %s4, %s332
        %s334 = smul.u32 2, %s31
        %p335 = scmp.eq.s32.totalorder %s30, 0
        %p336 = scmp.eq.s32.totalorder %s31, 0
        %p337 = pnand %p335, %p336
        %p338 = pneg %p337
        // Predicated region
        $region37: #{zero_bubble_model_forward.1} parent=27 // pred_check
          _
        $region38: #{zero_bubble_model_forward.1} parent=27 // pred_check_branch
          %340 = sbr.rel (%p337) target = $region40
        $region39: #{zero_bubble_model_forward.1} parent=27 // pred_region
          %s341 = smul.u32 %s29, 8
          $region41: #{zero_bubble_model_forward.1} parent=39
            #allocation10 [shape = 's32[1]{0}', space=sflag, size = 0x4, scoped, tag = 'scoped memory for zero_bubble_model_forward.1']
            %s342 = scalar_lea.hbm %s0, %s341
            // Predicated region
            $region42: #{zero_bubble_model_forward.1} parent=41 // pred_check
              _
            $region43: #{zero_bubble_model_forward.1} parent=41 // pred_check_branch
              %344 = sbr.rel target = $region45
            $region44: #{zero_bubble_model_forward.1} parent=41 // pred_region
              %345 = sst [smem:[#allocation13]] [#allocation12]
              %346 = sst [smem:[#allocation14]] [#allocation11]
            $region45: #{zero_bubble_model_forward.1} parent=41 // pred_fallthru
              _
            %348 = shalt.err (0)
            %s350 = sshll.u32 %s342, 4
            %s351 = int_to_ptr.hbm [resolvable:$true] %s350
            %s352 = sshll.u32 [#allocation2], 4
            %s353 = int_to_ptr.vmem [resolvable:$true] %s352
            %355 = dma.hbm_to_vmem [thread:$0]  %s351, 128, %s353, [#allocation10]
            %s356 = smul.u32 8, 1
            %s357 = sshll.u32 %s356, 4
            %358 = dma.done [#allocation10], %s357
        $region40: #{zero_bubble_model_forward.1} parent=27 // pred_fallthru
          _
        // Predicated region
        $region46: #{zero_bubble_model_forward.1} parent=27 // pred_check
          %p359 = pneg %p336
        $region47: #{zero_bubble_model_forward.1} parent=27 // pred_check_branch
          %361 = sbr.rel (%p359) target = $region49
        $region48: #{zero_bubble_model_forward.1} parent=27 // pred_region
          %v362 = vld [vmem:[#allocation2] sm:$0xff]
          %363 = vst [vmem:[%s320] sm:$0xff] %v362
        $region49: #{zero_bubble_model_forward.1} parent=27 // pred_fallthru
          _
        %v364 = vld [vmem:[#allocation2] sm:$0xff]
        %v365 = vld [vmem:[%s256] sm:$0xff]
        %v366 = vld [vmem:[%s256 + $0x8] sm:$0xff]
        %v367 = vld [vmem:[%s256 + $0x10] sm:$0xff]
        %v368 = vld [vmem:[%s256 + $0x18] sm:$0xff]
        %v369 = vld [vmem:[%s256 + $0x20] sm:$0xff]
        %v370 = vld [vmem:[%s256 + $0x28] sm:$0xff]
        %v371 = vld [vmem:[%s256 + $0x30] sm:$0xff]
        %v372 = vld [vmem:[%s256 + $0x38] sm:$0xff]
        %v373 = vld [vmem:[%s256 + $0x40] sm:$0xff]
        %v374 = vld [vmem:[%s256 + $0x48] sm:$0xff]
        %v375 = vld [vmem:[%s256 + $0x50] sm:$0xff]
        %v376 = vld [vmem:[%s256 + $0x58] sm:$0xff]
        %v377 = vld [vmem:[%s256 + $0x60] sm:$0xff]
        %v378 = vld [vmem:[%s256 + $0x68] sm:$0xff]
        %v379 = vld [vmem:[%s256 + $0x70] sm:$0xff]
        %v380 = vld [vmem:[%s256 + $0x78] sm:$0xff]
        %v381 = vld [vmem:[%s256 + $0x80] sm:$0xff]
        %v382 = vld [vmem:[%s256 + $0x88] sm:$0xff]
        %v383 = vld [vmem:[%s256 + $0x90] sm:$0xff]
        %v384 = vld [vmem:[%s256 + $0x98] sm:$0xff]
        %v385 = vld [vmem:[%s256 + $0xa0] sm:$0xff]
        %v386 = vld [vmem:[%s256 + $0xa8] sm:$0xff]
        %v387 = vld [vmem:[%s256 + $0xb0] sm:$0xff]
        %v388 = vld [vmem:[%s256 + $0xb8] sm:$0xff]
        %v389 = vld [vmem:[%s256 + $0xc0] sm:$0xff]
        %v390 = vld [vmem:[%s256 + $0xc8] sm:$0xff]
        %v391 = vld [vmem:[%s256 + $0xd0] sm:$0xff]
        %v392 = vld [vmem:[%s256 + $0xd8] sm:$0xff]
        %v393 = vld [vmem:[%s256 + $0xe0] sm:$0xff]
        %v394 = vld [vmem:[%s256 + $0xe8] sm:$0xff]
        %v395 = vld [vmem:[%s256 + $0xf0] sm:$0xff]
        %v396 = vld [vmem:[%s256 + $0xf8] sm:$0xff]
        %397 = vmatpush.xpose.msra.mxu0 %v380
        %398 = vmatpush.xpose.msra.mxu0 %v379
        %399 = vmatpush.xpose.msra.mxu0 %v378
        %400 = vmatpush.xpose.msra.mxu0 %v377
        %401 = vmatpush.xpose.msra.mxu0 %v376
        %402 = vmatpush.xpose.msra.mxu0 %v375
        %403 = vmatpush.xpose.msra.mxu0 %v374
        %404 = vmatpush.xpose.msra.mxu0 %v373
        %405 = vmatpush.xpose.msra.mxu0 %v372
        %406 = vmatpush.xpose.msra.mxu0 %v371
        %407 = vmatpush.xpose.msra.mxu0 %v370
        %408 = vmatpush.xpose.msra.mxu0 %v369
        %409 = vmatpush.xpose.msra.mxu0 %v368
        %410 = vmatpush.xpose.msra.mxu0 %v367
        %411 = vmatpush.xpose.msra.mxu0 %v366
        %412 = vmatpush.xpose.msra.mxu0 %v365
        %413 = vmatmul.f32.gmra.mxu0 %v364
        %v414 = vpop.f32.mrf.mxu0
        %v415 = vadd.f32 0.0, %v414
        %416 = vdwg.mxu0
        %417 = vmatpush.xpose.msra.mxu0 %v396
        %418 = vmatpush.xpose.msra.mxu0 %v395
        %419 = vmatpush.xpose.msra.mxu0 %v394
        %420 = vmatpush.xpose.msra.mxu0 %v393
        %421 = vmatpush.xpose.msra.mxu0 %v392
        %422 = vmatpush.xpose.msra.mxu0 %v391
        %423 = vmatpush.xpose.msra.mxu0 %v390
        %424 = vmatpush.xpose.msra.mxu0 %v389
        %425 = vmatpush.xpose.msra.mxu0 %v388
        %426 = vmatpush.xpose.msra.mxu0 %v387
        %427 = vmatpush.xpose.msra.mxu0 %v386
        %428 = vmatpush.xpose.msra.mxu0 %v385
        %429 = vmatpush.xpose.msra.mxu0 %v384
        %430 = vmatpush.xpose.msra.mxu0 %v383
        %431 = vmatpush.xpose.msra.mxu0 %v382
        %432 = vmatpush.xpose.msra.mxu0 %v381
        %433 = vmatmul.f32.gmra.mxu0 %v364
        %v434 = vpop.f32.mrf.mxu0
        %v435 = vadd.f32 0.0, %v434
        %436 = vdwg.mxu0
        %437 = vst [vmem:[%s333] sm:$0xff] %v415
        %438 = vst [vmem:[%s333 + $0x8] sm:$0xff] %v435
        %v439 = vld [vmem:[%s266] sm:$0xff]
        %v440 = vld [vmem:[%s266 + $0x8] sm:$0xff]
        %v441 = vld [vmem:[%s266 + $0x10] sm:$0xff]
        %v442 = vld [vmem:[%s266 + $0x18] sm:$0xff]
        %v443 = vld [vmem:[%s266 + $0x20] sm:$0xff]
        %v444 = vld [vmem:[%s266 + $0x28] sm:$0xff]
        %v445 = vld [vmem:[%s266 + $0x30] sm:$0xff]
        %v446 = vld [vmem:[%s266 + $0x38] sm:$0xff]
        %v447 = vld [vmem:[%s266 + $0x40] sm:$0xff]
        %v448 = vld [vmem:[%s266 + $0x48] sm:$0xff]
        %v449 = vld [vmem:[%s266 + $0x50] sm:$0xff]
        %v450 = vld [vmem:[%s266 + $0x58] sm:$0xff]
        %v451 = vld [vmem:[%s266 + $0x60] sm:$0xff]
        %v452 = vld [vmem:[%s266 + $0x68] sm:$0xff]
        %v453 = vld [vmem:[%s266 + $0x70] sm:$0xff]
        %v454 = vld [vmem:[%s266 + $0x78] sm:$0xff]
        %v455 = vld [vmem:[%s266 + $0x80] sm:$0xff]
        %v456 = vld [vmem:[%s266 + $0x88] sm:$0xff]
        %v457 = vld [vmem:[%s266 + $0x90] sm:$0xff]
        %v458 = vld [vmem:[%s266 + $0x98] sm:$0xff]
        %v459 = vld [vmem:[%s266 + $0xa0] sm:$0xff]
        %v460 = vld [vmem:[%s266 + $0xa8] sm:$0xff]
        %v461 = vld [vmem:[%s266 + $0xb0] sm:$0xff]
        %v462 = vld [vmem:[%s266 + $0xb8] sm:$0xff]
        %v463 = vld [vmem:[%s266 + $0xc0] sm:$0xff]
        %v464 = vld [vmem:[%s266 + $0xc8] sm:$0xff]
        %v465 = vld [vmem:[%s266 + $0xd0] sm:$0xff]
        %v466 = vld [vmem:[%s266 + $0xd8] sm:$0xff]
        %v467 = vld [vmem:[%s266 + $0xe0] sm:$0xff]
        %v468 = vld [vmem:[%s266 + $0xe8] sm:$0xff]
        %v469 = vld [vmem:[%s266 + $0xf0] sm:$0xff]
        %v470 = vld [vmem:[%s266 + $0xf8] sm:$0xff]
        %471 = vmatpush.msra.mxu0 %v454
        %472 = vmatpush.msra.mxu0 %v453
        %473 = vmatpush.msra.mxu0 %v452
        %474 = vmatpush.msra.mxu0 %v451
        %475 = vmatpush.msra.mxu0 %v450
        %476 = vmatpush.msra.mxu0 %v449
        %477 = vmatpush.msra.mxu0 %v448
        %478 = vmatpush.msra.mxu0 %v447
        %479 = vmatpush.msra.mxu0 %v446
        %480 = vmatpush.msra.mxu0 %v445
        %481 = vmatpush.msra.mxu0 %v444
        %482 = vmatpush.msra.mxu0 %v443
        %483 = vmatpush.msra.mxu0 %v442
        %484 = vmatpush.msra.mxu0 %v441
        %485 = vmatpush.msra.mxu0 %v440
        %486 = vmatpush.msra.mxu0 %v439
        %487 = vmatmul.f32.gmra.mxu0 %v415
        %v488 = vpop.f32.mrf.mxu0
        %v489 = vadd.f32 0.0, %v488
        %490 = vdwg.mxu0
        %491 = vmatpush.msra.mxu0 %v470
        %492 = vmatpush.msra.mxu0 %v469
        %493 = vmatpush.msra.mxu0 %v468
        %494 = vmatpush.msra.mxu0 %v467
        %495 = vmatpush.msra.mxu0 %v466
        %496 = vmatpush.msra.mxu0 %v465
        %497 = vmatpush.msra.mxu0 %v464
        %498 = vmatpush.msra.mxu0 %v463
        %499 = vmatpush.msra.mxu0 %v462
        %500 = vmatpush.msra.mxu0 %v461
        %501 = vmatpush.msra.mxu0 %v460
        %502 = vmatpush.msra.mxu0 %v459
        %503 = vmatpush.msra.mxu0 %v458
        %504 = vmatpush.msra.mxu0 %v457
        %505 = vmatpush.msra.mxu0 %v456
        %506 = vmatpush.msra.mxu0 %v455
        %507 = vmatmul.f32.gmra.mxu0 %v435
        %v508 = vpop.f32.mrf.mxu0
        %v509 = vadd.f32 %v489, %v508
        %510 = vdwg.mxu0
        // Predicated region
        $region50: #{zero_bubble_model_forward.1} parent=27 // pred_check
          %p511 = pneg %p336
        $region51: #{zero_bubble_model_forward.1} parent=27 // pred_check_branch
          %513 = sbr.rel (%p511) target = $region53
        $region52: #{zero_bubble_model_forward.1} parent=27 // pred_region
          %514 = vst [vmem:[#allocation3] sm:$0xff] %v509
        $region53: #{zero_bubble_model_forward.1} parent=27 // pred_fallthru
          _
        %p515 = scmp.gt.s32.totalorder %s31, 0
        // Predicated region
        $region54: #{zero_bubble_model_forward.1} parent=27 // pred_check
          %p516 = pneg %p515
        $region55: #{zero_bubble_model_forward.1} parent=27 // pred_check_branch
          %518 = sbr.rel (%p516) target = $region57
        $region56: #{zero_bubble_model_forward.1} parent=27 // pred_region
          %v519 = vld [vmem:[#allocation3] sm:$0xff]
          %v520 = vadd.f32 %v519, %v509
          %521 = vst [vmem:[#allocation3] sm:$0xff] %v520
        $region57: #{zero_bubble_model_forward.1} parent=27 // pred_fallthru
          _
        %p522 = scmp.eq.s32.totalorder %s31, 1
        // Predicated region
        $region58: #{zero_bubble_model_forward.1} parent=27 // pred_check
          %p523 = pneg %p522
        $region59: #{zero_bubble_model_forward.1} parent=27 // pred_check_branch
          %525 = sbr.rel (%p523) target = $region61
        $region60: #{zero_bubble_model_forward.1} parent=27 // pred_region
          %v526 = vld [vmem:[#allocation3] sm:$0xff]
          %527 = vst [vmem:[#allocation2] sm:$0xff] %v526
        $region61: #{zero_bubble_model_forward.1} parent=27 // pred_fallthru
          _
        %p528 = scmp.eq.s32.totalorder %s30, 1
        %p529 = pnand %p522, %p528
        %p530 = pneg %p529
        // Predicated region
        $region62: #{zero_bubble_model_forward.1} parent=27 // pred_check
          _
        $region63: #{zero_bubble_model_forward.1} parent=27 // pred_check_branch
          %532 = sbr.rel (%p529) target = $region65
        $region64: #{zero_bubble_model_forward.1} parent=27 // pred_region
          %v533 = vld [vmem:[#allocation3] sm:$0xff]
          %534 = vst [vmem:[#allocation9] sm:$0xff] %v533
        $region65: #{zero_bubble_model_forward.1} parent=27 // pred_fallthru
          _
        %p535 = scmp.lt.s32.totalorder %s30, 1
        %s536 = scalar_select %p535, %s30, 1
        %p537 = scmp.lt.s32.totalorder %s29, 0
        %s538 = scalar_select %p537, %s29, 0
        %s539 = sadd.s32 %s538, %s536
        %s540 = smul.addr %s539, 8
        %s541 = scalar_lea.vmem %s3, %s540
        %s542 = smul.u32 2, %s31
        %p543 = scmp.lt.s32.totalorder %s30, 1
        %s544 = scalar_select %p543, %s30, 1
        %p545 = scmp.lt.s32.totalorder %s29, 0
        %s546 = scalar_select %p545, %s29, 0
        %p547 = scmp.lt.s32.totalorder %s542, 3
        %s548 = scalar_select %p547, %s542, 3
        %s549 = smul.addr %s546, 4
        %s550 = sadd.s32 %s548, %s549
        %s551 = smul.addr %s544, 4
        %s552 = sadd.s32 %s550, %s551
        %s553 = smul.addr %s552, 8
        %s554 = scalar_lea.vmem %s4, %s553
        // Predicated region
        $region66: #{zero_bubble_model_forward.1} parent=27 // pred_check
          %p555 = pneg %p119
        $region67: #{zero_bubble_model_forward.1} parent=27 // pred_check_branch
          %557 = sbr.rel (%p555) target = $region69
        $region68: #{zero_bubble_model_forward.1} parent=27 // pred_region
          _
        $region69: #{zero_bubble_model_forward.1} parent=27 // pred_fallthru
          _
        // Predicated region
        $region70: #{zero_bubble_model_forward.1} parent=27 // pred_check
          %p558 = pneg %p149
        $region71: #{zero_bubble_model_forward.1} parent=27 // pred_check_branch
          %560 = sbr.rel (%p558) target = $region73
        $region72: #{zero_bubble_model_forward.1} parent=27 // pred_region
          %s561 = smul.u32 2, %s31
        $region73: #{zero_bubble_model_forward.1} parent=27 // pred_fallthru
          _
        // Predicated region
        $region74: #{zero_bubble_model_forward.1} parent=27 // pred_check
          %p562 = pneg %p175
        $region75: #{zero_bubble_model_forward.1} parent=27 // pred_check_branch
          %564 = sbr.rel (%p562) target = $region77
        $region76: #{zero_bubble_model_forward.1} parent=27 // pred_region
          %566 = vsyncadd [#allocation6], 0
          %s567 = smul.addr %s29, 8
          %s568 = scalar_lea.hbm %s5, %s567
          %s570 = sshll.u32 [#allocation9], 4
          %s571 = int_to_ptr.vmem [resolvable:$true] %s570
          %s572 = sshll.u32 %s568, 4
          %s573 = int_to_ptr.hbm [resolvable:$true] %s572
          %575 = dma.vmem_to_hbm [thread:$0]  %s571, 128, %s573, [#allocation6]
        $region77: #{zero_bubble_model_forward.1} parent=27 // pred_fallthru
          _
        // Predicated region
        $region78: #{zero_bubble_model_forward.1} parent=27 // pred_check
          %p576 = pneg %p175
        $region79: #{zero_bubble_model_forward.1} parent=27 // pred_check_branch
          %578 = sbr.rel (%p576) target = $region81
        $region80: #{zero_bubble_model_forward.1} parent=27 // pred_region
          %580 = dma.done [#allocation6], 128
        $region81: #{zero_bubble_model_forward.1} parent=27 // pred_fallthru
          _
      $region28: #{zero_bubble_model_forward.1} parent=5 // pred_fallthru
        _
      %p581 = scmp.le.s32.totalorder 2, %s19
      // Predicated region
      $region82: #{zero_bubble_model_forward.1} parent=5 // pred_check
        %p582 = pneg %p581
      $region83: #{zero_bubble_model_forward.1} parent=5 // pred_check_branch
        %584 = sbr.rel (%p582) target = $region85
      $region84: #{zero_bubble_model_forward.1} parent=5 // pred_region
        %s585 = ssub.s32 %s19, 2
        // Predicated region
        $region86: #{zero_bubble_model_forward.1} parent=84 // pred_check
          %p586 = pneg %p125
        $region87: #{zero_bubble_model_forward.1} parent=84 // pred_check_branch
          %588 = sbr.rel (%p586) target = $region89
        $region88: #{zero_bubble_model_forward.1} parent=84 // pred_region
          %p589 = scmp.lt.s32.totalorder %s33, 1
          %s590 = scalar_select %p589, %s33, 1
          %p591 = scmp.lt.s32.totalorder %s32, 0
          %s592 = scalar_select %p591, %s32, 0
          %s593 = sadd.s32 %s592, %s590
          %s594 = smul.addr %s593, 8
          %s595 = scalar_lea.vmem %s3, %s594
        $region89: #{zero_bubble_model_forward.1} parent=84 // pred_fallthru
          _
        // Predicated region
        $region90: #{zero_bubble_model_forward.1} parent=84 // pred_check
          %p596 = pneg %p155
        $region91: #{zero_bubble_model_forward.1} parent=84 // pred_check_branch
          %598 = sbr.rel (%p596) target = $region93
        $region92: #{zero_bubble_model_forward.1} parent=84 // pred_region
          %s599 = smul.u32 2, %s34
          %p600 = scmp.lt.s32.totalorder %s33, 1
          %s601 = scalar_select %p600, %s33, 1
          %p602 = scmp.lt.s32.totalorder %s32, 0
          %s603 = scalar_select %p602, %s32, 0
          %p604 = scmp.lt.s32.totalorder %s599, 3
          %s605 = scalar_select %p604, %s599, 3
          %s606 = smul.addr %s603, 4
          %s607 = sadd.s32 %s605, %s606
          %s608 = smul.addr %s601, 4
          %s609 = sadd.s32 %s607, %s608
          %s610 = smul.addr %s609, 8
          %s611 = scalar_lea.vmem %s4, %s610
        $region93: #{zero_bubble_model_forward.1} parent=84 // pred_fallthru
          _
      $region85: #{zero_bubble_model_forward.1} parent=5 // pred_fallthru
        _
    $region6: #{zero_bubble_model_forward.1} parent=1 // loop_footer
      %s23 = sadd.s32 1, %s19
    $region7: #{zero_bubble_model_forward.1} parent=1 // loop_footer_branch
      %18 = sbr.rel target = $region3
    $region8: #{zero_bubble_model_forward.1} parent=1 // loop_exit
      _
    %612 = vsyncpa [#allocation5], 1
    %s613 = scalar_lea.sflag [#allocation5], 1
    %614 = vsyncpa %s613, 1
    %615 = vsyncpa [#allocation8], 1
    %s616 = scalar_lea.sflag [#allocation8], 1
    %617 = vsyncpa %s616, 1
    %618 = vsyncpa [#allocation6], 1
    %s619 = scalar_lea.sflag [#allocation6], 1
    %620 = vsyncpa %s619, 1

</llo_original>
